<compile_context>
chip_gen: v5e
topology: v5e:2x2
jax: 0.10.0
libtpu: 0.0.40
codegen_flags: <defaults>
</compile_context>

<pallas_src>
import jax
import jax.numpy as jnp
from jax.experimental import pallas as pl
from jax.experimental.pallas import tpu as pltpu

_BATCH_ALIGN = 16   # bf16 sublane packing: keep batch tiles 16-row aligned


def _round_up(x, m):
    return (x + m - 1) // m * m


def _choose_tile(B, block_batch):
    """Pick a batch tile TB (multiple of 16) that (a) bounds tail padding,
    (b) yields >= 2 grid steps for B > 32 so v7x's two TensorCores both get
    work, and (c) never exceeds block_batch by much."""
    n_steps = pl.cdiv(B, block_batch)
    if B > 2 * _BATCH_ALIGN:
        n_steps = max(n_steps, 2)
    tb = _round_up(pl.cdiv(B, n_steps), _BATCH_ALIGN)
    b_pad = _round_up(B, tb)
    return tb, b_pad


def actor_net_kernel(s_ref,
                     w1_ref, b1_ref,
                     w2_ref, b2_ref,
                     w3_ref, b3_ref,
                     w4_ref, b4_ref,
                     out_ref):
    """One (TB, S) batch tile through the fused 4-layer MLP.

    s_ref is already bf16 (cast in the wrapper); weights are bf16 (MXU-native);
    accumulation, bias add and ReLU stay in f32 on the VPU.
    """
    # hidden_1 + ReLU
    h = jnp.dot(s_ref[...], w1_ref[...],
                preferred_element_type=jnp.float32) + b1_ref[...]
    h = jnp.maximum(h, 0.0)

    # hidden_2 + ReLU
    h = jnp.dot(h.astype(jnp.bfloat16), w2_ref[...],
                preferred_element_type=jnp.float32) + b2_ref[...]
    h = jnp.maximum(h, 0.0)

    # hidden_3 + ReLU
    h = jnp.dot(h.astype(jnp.bfloat16), w3_ref[...],
                preferred_element_type=jnp.float32) + b3_ref[...]
    h = jnp.maximum(h, 0.0)

    # output layer (logits, no activation, true width A)
    logits = jnp.dot(h.astype(jnp.bfloat16), w4_ref[...],
                     preferred_element_type=jnp.float32) + b4_ref[...]
    out_ref[...] = logits.astype(out_ref.dtype)


def prepare_params(params):
    """Cast weights to bf16 (MXU inputs, halves weight DMA) and keep biases as
    (1, N) f32. No feature padding: full-array blocks are legal at any width."""
    prepared = {}
    for i in range(1, 5):
        prepared[f"w{i}"] = params[f"w{i}"].astype(jnp.bfloat16)
        prepared[f"b{i}"] = params[f"b{i}"].reshape(1, -1).astype(jnp.float32)
    return prepared


def actor_net_forward(s, pparams, block_batch=1024):
    """s: (B, state_size). pparams: output of prepare_params.

    block_batch: max rows per batch tile. 1024 amortizes the ~0.35 us per-grid-
    step overhead on v6e/v7x; on v5e (memory-bound, 1 vst slot) pass 256-512.
    """
    B, S = s.shape
    A = pparams["b4"].shape[1]
    TB, B_pad = _choose_tile(B, block_batch)

    # Fused cast (+ batch-row zero pad only when needed) -- no extra HBM pass
    # when B is already tile-aligned.
    s_bf = s.astype(jnp.bfloat16)
    if B_pad != B:
        s_bf = jnp.pad(s_bf, ((0, B_pad - B), (0, 0)))

    # Weights/biases: full-array blocks, constant index map -> VMEM-resident.
    w_spec = lambda a: pl.BlockSpec(a.shape, lambda i: (0, 0))

    out = pl.pallas_call(
        actor_net_kernel,
        out_shape=jax.ShapeDtypeStruct((B_pad, A), jnp.float32),
        grid=(B_pad // TB,),
        in_specs=[
            pl.BlockSpec((TB, S), lambda i: (i, 0)),
            w_spec(pparams["w1"]), w_spec(pparams["b1"]),
            w_spec(pparams["w2"]), w_spec(pparams["b2"]),
            w_spec(pparams["w3"]), w_spec(pparams["b3"]),
            w_spec(pparams["w4"]), w_spec(pparams["b4"]),
        ],
        out_specs=pl.BlockSpec((TB, A), lambda i: (i, 0)),
        compiler_params=pltpu.CompilerParams(
            dimension_semantics=("parallel",)),
    )(s_bf,
      pparams["w1"], pparams["b1"],
      pparams["w2"], pparams["b2"],
      pparams["w3"], pparams["b3"],
      pparams["w4"], pparams["b4"])

    return out[:B]


def init_params(key, state_size, action_size, hidden_dim=(256, 128, 64)):
    """Deterministic init mimicking nn.Linear's U(-1/sqrt(in), 1/sqrt(in)).
    Weights are stored as (in_features, out_features) = W.T of PyTorch."""
    dims = [state_size, hidden_dim[0], hidden_dim[1], hidden_dim[2], action_size]
    params = {}
    for i in range(4):
        fan_in, fan_out = dims[i], dims[i + 1]
        key, kw, kb = jax.random.split(key, 3)
        bound = 1.0 / jnp.sqrt(jnp.float32(fan_in))
        params[f"w{i + 1}"] = jax.random.uniform(
            kw, (fan_in, fan_out), jnp.float32, -bound, bound)
        params[f"b{i + 1}"] = jax.random.uniform(
            kb, (1, fan_out), jnp.float32, -bound, bound)
    return params


def actor_net_ref(s, params):
    """Pure-JAX reference mirroring the kernel math (bf16 MXU inputs,
    f32 accumulation, f32 bias/ReLU)."""
    def mm(x, w):
        return jnp.dot(x.astype(jnp.bfloat16), w.astype(jnp.bfloat16),
                       preferred_element_type=jnp.float32)
    h = jnp.maximum(mm(s, params["w1"]) + params["b1"], 0.0)
    h = jnp.maximum(mm(h, params["w2"]) + params["b2"], 0.0)
    h = jnp.maximum(mm(h, params["w3"]) + params["b3"], 0.0)
    return mm(h, params["w4"]) + params["b4"]


if __name__ == "__main__":
    state_size = 32
    action_size = 8

    key = jax.random.PRNGKey(0)
    key, ks_small, ks_big = jax.random.split(key, 3)

    params = init_params(key, state_size, action_size)
    pparams = prepare_params(params)

    # Small batch (single grid step, block == full array) and a larger batch
    # that is not a tile multiple (exercises >=2 pipelined grid steps, the
    # parallel batch axis, and the padded tail tile).
    for batch, ks in ((8, ks_small), (1000, ks_big)):
        s = jax.random.normal(ks, (batch, state_size), jnp.float32)
        logits = actor_net_forward(s, pparams)
        jax.block_until_ready(logits)

        ref = actor_net_ref(s, params)
        assert logits.shape == (batch, action_size)
        assert jnp.allclose(logits, ref, atol=1e-4, rtol=1e-4), \
            f"mismatch vs reference at batch={batch}"

    print("KERNEL_OK")
</pallas_src>

<mosaic_0001>
module attributes {stable_mosaic.version = 11 : i64} {
  func.func @actor_net_kernel(%arg0: i32, %arg1: memref<16x32xbf16, #tpu.memory_space<vmem>>, %arg2: memref<32x256xbf16, #tpu.memory_space<vmem>>, %arg3: memref<1x256xf32, #tpu.memory_space<vmem>>, %arg4: memref<256x128xbf16, #tpu.memory_space<vmem>>, %arg5: memref<1x128xf32, #tpu.memory_space<vmem>>, %arg6: memref<128x64xbf16, #tpu.memory_space<vmem>>, %arg7: memref<1x64xf32, #tpu.memory_space<vmem>>, %arg8: memref<64x8xbf16, #tpu.memory_space<vmem>>, %arg9: memref<1x8xf32, #tpu.memory_space<vmem>>, %arg10: memref<16x8xf32, #tpu.memory_space<vmem>>) attributes {dimension_semantics = [#tpu.dimension_semantics<parallel>], iteration_bounds = array<i64: 1>, scalar_prefetch = 0 : i64, scratch_operands = 0 : i64, tpu.core_type = #tpu.core_type<tc>, window_params = [{transform_indices = @transform_0, window_bounds = array<i64: 16, 32>}, {pipeline_mode = #tpu.pipeline_mode<synchronous>, transform_indices = @transform_1, window_bounds = array<i64: 32, 256>}, {pipeline_mode = #tpu.pipeline_mode<synchronous>, transform_indices = @transform_2, window_bounds = array<i64: 1, 256>}, {pipeline_mode = #tpu.pipeline_mode<synchronous>, transform_indices = @transform_3, window_bounds = array<i64: 256, 128>}, {pipeline_mode = #tpu.pipeline_mode<synchronous>, transform_indices = @transform_4, window_bounds = array<i64: 1, 128>}, {pipeline_mode = #tpu.pipeline_mode<synchronous>, transform_indices = @transform_5, window_bounds = array<i64: 128, 64>}, {pipeline_mode = #tpu.pipeline_mode<synchronous>, transform_indices = @transform_6, window_bounds = array<i64: 1, 64>}, {pipeline_mode = #tpu.pipeline_mode<synchronous>, transform_indices = @transform_7, window_bounds = array<i64: 64, 8>}, {pipeline_mode = #tpu.pipeline_mode<synchronous>, transform_indices = @transform_8, window_bounds = array<i64: 1, 8>}, {transform_indices = @transform_9, window_bounds = array<i64: 16, 8>}]} {
    %c0 = arith.constant 0 : index
    %c0_0 = arith.constant 0 : index
    %0 = vector.load %arg1[%c0, %c0_0] : memref<16x32xbf16, #tpu.memory_space<vmem>>, vector<16x32xbf16>
    %c0_1 = arith.constant 0 : index
    %c0_2 = arith.constant 0 : index
    %1 = vector.load %arg2[%c0_1, %c0_2] : memref<32x256xbf16, #tpu.memory_space<vmem>>, vector<32x256xbf16>
    %cst = arith.constant dense<0.000000e+00> : vector<16x256xf32>
    %2 = tpu.matmul %0, %1, %cst {dimension_numbers = #tpu.dot_dimension_numbers<[1], [0], [0], [1], [0, 0, 1, 1], [], []>} : vector<16x32xbf16>, vector<32x256xbf16>, vector<16x256xf32> -> vector<16x256xf32>
    %c0_3 = arith.constant 0 : index
    %c0_4 = arith.constant 0 : index
    %3 = vector.load %arg3[%c0_3, %c0_4] : memref<1x256xf32, #tpu.memory_space<vmem>>, vector<1x256xf32>
    %4 = vector.broadcast %3 : vector<1x256xf32> to vector<16x256xf32>
    %5 = arith.addf %2, %4 : vector<16x256xf32>
    %cst_5 = arith.constant 0.000000e+00 : f32
    %6 = vector.broadcast %cst_5 : f32 to vector<16x256xf32>
    %7 = arith.maximumf %5, %6 : vector<16x256xf32>
    %8 = arith.truncf %7 : vector<16x256xf32> to vector<16x256xbf16>
    %c0_6 = arith.constant 0 : index
    %c0_7 = arith.constant 0 : index
    %9 = vector.load %arg4[%c0_6, %c0_7] : memref<256x128xbf16, #tpu.memory_space<vmem>>, vector<256x128xbf16>
    %cst_8 = arith.constant dense<0.000000e+00> : vector<16x128xf32>
    %10 = tpu.matmul %8, %9, %cst_8 {dimension_numbers = #tpu.dot_dimension_numbers<[1], [0], [0], [1], [0, 0, 1, 1], [], []>} : vector<16x256xbf16>, vector<256x128xbf16>, vector<16x128xf32> -> vector<16x128xf32>
    %c0_9 = arith.constant 0 : index
    %c0_10 = arith.constant 0 : index
    %11 = vector.load %arg5[%c0_9, %c0_10] : memref<1x128xf32, #tpu.memory_space<vmem>>, vector<1x128xf32>
    %12 = vector.broadcast %11 : vector<1x128xf32> to vector<16x128xf32>
    %13 = arith.addf %10, %12 : vector<16x128xf32>
    %cst_11 = arith.constant 0.000000e+00 : f32
    %14 = vector.broadcast %cst_11 : f32 to vector<16x128xf32>
    %15 = arith.maximumf %13, %14 : vector<16x128xf32>
    %16 = arith.truncf %15 : vector<16x128xf32> to vector<16x128xbf16>
    %c0_12 = arith.constant 0 : index
    %c0_13 = arith.constant 0 : index
    %17 = vector.load %arg6[%c0_12, %c0_13] : memref<128x64xbf16, #tpu.memory_space<vmem>>, vector<128x64xbf16>
    %cst_14 = arith.constant dense<0.000000e+00> : vector<16x64xf32>
    %18 = tpu.matmul %16, %17, %cst_14 {dimension_numbers = #tpu.dot_dimension_numbers<[1], [0], [0], [1], [0, 0, 1, 1], [], []>} : vector<16x128xbf16>, vector<128x64xbf16>, vector<16x64xf32> -> vector<16x64xf32>
    %c0_15 = arith.constant 0 : index
    %c0_16 = arith.constant 0 : index
    %19 = vector.load %arg7[%c0_15, %c0_16] : memref<1x64xf32, #tpu.memory_space<vmem>>, vector<1x64xf32>
    %20 = vector.broadcast %19 : vector<1x64xf32> to vector<16x64xf32>
    %21 = arith.addf %18, %20 : vector<16x64xf32>
    %cst_17 = arith.constant 0.000000e+00 : f32
    %22 = vector.broadcast %cst_17 : f32 to vector<16x64xf32>
    %23 = arith.maximumf %21, %22 : vector<16x64xf32>
    %24 = arith.truncf %23 : vector<16x64xf32> to vector<16x64xbf16>
    %c0_18 = arith.constant 0 : index
    %c0_19 = arith.constant 0 : index
    %25 = vector.load %arg8[%c0_18, %c0_19] : memref<64x8xbf16, #tpu.memory_space<vmem>>, vector<64x8xbf16>
    %cst_20 = arith.constant dense<0.000000e+00> : vector<16x8xf32>
    %26 = tpu.matmul %24, %25, %cst_20 {dimension_numbers = #tpu.dot_dimension_numbers<[1], [0], [0], [1], [0, 0, 1, 1], [], []>} : vector<16x64xbf16>, vector<64x8xbf16>, vector<16x8xf32> -> vector<16x8xf32>
    %c0_21 = arith.constant 0 : index
    %c0_22 = arith.constant 0 : index
    %27 = vector.load %arg9[%c0_21, %c0_22] : memref<1x8xf32, #tpu.memory_space<vmem>>, vector<1x8xf32>
    %28 = vector.broadcast %27 : vector<1x8xf32> to vector<16x8xf32>
    %29 = arith.addf %26, %28 : vector<16x8xf32>
    %c0_23 = arith.constant 0 : index
    %c0_24 = arith.constant 0 : index
    %30 = vector.load %arg10[%c0_23, %c0_24] : memref<16x8xf32, #tpu.memory_space<vmem>>, vector<16x8xf32>
    tpu.vector_store %arg10[%c0_23, %c0_24], %29 {strides = array<i32>} : memref<16x8xf32, #tpu.memory_space<vmem>>, vector<16x8xf32>,
    return
  }
  func.func @transform_0(%arg0: i32) -> (i32, i32) {
    %c0_i32 = arith.constant 0 : i32
    %c0_i32_0 = arith.constant 0 : i32
    return %arg0, %c0_i32 : i32, i32
  }
  func.func @transform_1(%arg0: i32) -> (i32, i32) {
    %c0_i32 = arith.constant 0 : i32
    %c0_i32_0 = arith.constant 0 : i32
    %c0_i32_1 = arith.constant 0 : i32
    return %c0_i32, %c0_i32_0 : i32, i32
  }
  func.func @transform_2(%arg0: i32) -> (i32, i32) {
    %c0_i32 = arith.constant 0 : i32
    %c0_i32_0 = arith.constant 0 : i32
    %c0_i32_1 = arith.constant 0 : i32
    return %c0_i32, %c0_i32_0 : i32, i32
  }
  func.func @transform_3(%arg0: i32) -> (i32, i32) {
    %c0_i32 = arith.constant 0 : i32
    %c0_i32_0 = arith.constant 0 : i32
    %c0_i32_1 = arith.constant 0 : i32
    return %c0_i32, %c0_i32_0 : i32, i32
  }
  func.func @transform_4(%arg0: i32) -> (i32, i32) {
    %c0_i32 = arith.constant 0 : i32
    %c0_i32_0 = arith.constant 0 : i32
    %c0_i32_1 = arith.constant 0 : i32
    return %c0_i32, %c0_i32_0 : i32, i32
  }
  func.func @transform_5(%arg0: i32) -> (i32, i32) {
    %c0_i32 = arith.constant 0 : i32
    %c0_i32_0 = arith.constant 0 : i32
    %c0_i32_1 = arith.constant 0 : i32
    return %c0_i32, %c0_i32_0 : i32, i32
  }
  func.func @transform_6(%arg0: i32) -> (i32, i32) {
    %c0_i32 = arith.constant 0 : i32
    %c0_i32_0 = arith.constant 0 : i32
    %c0_i32_1 = arith.constant 0 : i32
    return %c0_i32, %c0_i32_0 : i32, i32
  }
  func.func @transform_7(%arg0: i32) -> (i32, i32) {
    %c0_i32 = arith.constant 0 : i32
    %c0_i32_0 = arith.constant 0 : i32
    %c0_i32_1 = arith.constant 0 : i32
    return %c0_i32, %c0_i32_0 : i32, i32
  }
  func.func @transform_8(%arg0: i32) -> (i32, i32) {
    %c0_i32 = arith.constant 0 : i32
    %c0_i32_0 = arith.constant 0 : i32
    %c0_i32_1 = arith.constant 0 : i32
    return %c0_i32, %c0_i32_0 : i32, i32
  }
  func.func @transform_9(%arg0: i32) -> (i32, i32) {
    %c0_i32 = arith.constant 0 : i32
    %c0_i32_0 = arith.constant 0 : i32
    return %arg0, %c0_i32 : i32, i32
  }
}

</mosaic_0001>

<llo_original>
// kernel: tpu_custom_call.1
$region0: #{tpu_custom_call.1}
  #allocation0 [shape = 'u32[]', space=smem, size = 0x4, offset = 0x4, fixed_abs, tag = 'smem constant byte address 0x4 - core index']
  #allocation1 [shape = 'u32[72,128]{1,0:T(1,128)}', space=vmem, size = 0x9000, scoped, tag = 'internal scratch']
  %s0 = inlined_call_operand.vmem [shape: bf16[16,32], index: 0, kind: input, shape index: {}]
  %s1 = inlined_call_operand.vmem [shape: bf16[32,256], index: 1, kind: input, shape index: {}]
  %s2 = inlined_call_operand.vmem [shape: f32[1,256], index: 2, kind: input, shape index: {}]
  %s3 = inlined_call_operand.hbm [shape: bf16[256,128], index: 3, kind: input, shape index: {}]
  %s4 = inlined_call_operand.vmem [shape: f32[1,128], index: 4, kind: input, shape index: {}]
  %s5 = inlined_call_operand.vmem [shape: bf16[128,64], index: 5, kind: input, shape index: {}]
  %s6 = inlined_call_operand.vmem [shape: f32[1,64], index: 6, kind: input, shape index: {}]
  %s7 = inlined_call_operand.vmem [shape: bf16[64,8], index: 7, kind: input, shape index: {}]
  %s8 = inlined_call_operand.vmem [shape: f32[1,8], index: 8, kind: input, shape index: {}]
  %s9 = inlined_call_operand.vmem [shape: f32[16,8], index: 9, kind: output, shape index: {}]
  %s10 = sld [smem:[#allocation0]]
  $region50: #{tpu_custom_call.1} parent=0
    _
  %s12 = ssub.s32 1, %s10
  %s13 = scalar_select 0, %s12, %s10
  $region1: #{tpu_custom_call.1} parent=0
    #allocation2 [shape = 'u8[65536]{0}', space=vmem, size = 0x10000, scoped, tag = 'input window, operand 3, single buffered']
    #allocation3 [shape = 's32[1]{0}', space=sflag, size = 0x4, scoped, tag = 'scoped memory for tpu_custom_call.1']
    %14 = vsyncpa [#allocation3], 0
    // Predicated region
    $region2: #{tpu_custom_call.1} parent=1 // pred_check
      _
    $region3: #{tpu_custom_call.1} parent=1 // pred_check_branch
      %16 = sbr.rel (0) target = $region5
    $region4: #{tpu_custom_call.1} parent=1 // pred_region
      _
    $region5: #{tpu_custom_call.1} parent=1 // pred_fallthru
      _
    // Predicated region
    $region6: #{tpu_custom_call.1} parent=1 // pred_check
      _
    $region7: #{tpu_custom_call.1} parent=1 // pred_check_branch
      %18 = sbr.rel (0) target = $region9
    $region8: #{tpu_custom_call.1} parent=1 // pred_region
      _
    $region9: #{tpu_custom_call.1} parent=1 // pred_fallthru
      _
    // Predicated region
    $region10: #{tpu_custom_call.1} parent=1 // pred_check
      _
    $region11: #{tpu_custom_call.1} parent=1 // pred_check_branch
      %20 = sbr.rel (0) target = $region13
    $region12: #{tpu_custom_call.1} parent=1 // pred_region
      _
    $region13: #{tpu_custom_call.1} parent=1 // pred_fallthru
      _
    // Predicated region
    $region14: #{tpu_custom_call.1} parent=1 // pred_check
      _
    $region15: #{tpu_custom_call.1} parent=1 // pred_check_branch
      %22 = sbr.rel (0) target = $region17
    $region16: #{tpu_custom_call.1} parent=1 // pred_region
      %24 = vsyncadd [#allocation3], 0
      %s25 = sshll.u32 %s3, 4
      %s26 = int_to_ptr.hbm [resolvable:$true] %s25
      %s27 = sshll.u32 [#allocation2], 4
      %s28 = int_to_ptr.vmem [resolvable:$true] %s27
      %33 = dma.hbm_to_vmem [thread:$0]  %s26, 2048, %s28, [#allocation3], 64, 64, 4
    $region17: #{tpu_custom_call.1} parent=1 // pred_fallthru
      _
    // Predicated region
    $region18: #{tpu_custom_call.1} parent=1 // pred_check
      _
    $region19: #{tpu_custom_call.1} parent=1 // pred_check_branch
      %35 = sbr.rel (0) target = $region21
    $region20: #{tpu_custom_call.1} parent=1 // pred_region
      _
    $region21: #{tpu_custom_call.1} parent=1 // pred_fallthru
      _
    // Predicated region
    $region22: #{tpu_custom_call.1} parent=1 // pred_check
      _
    $region23: #{tpu_custom_call.1} parent=1 // pred_check_branch
      %37 = sbr.rel (0) target = $region25
    $region24: #{tpu_custom_call.1} parent=1 // pred_region
      _
    $region25: #{tpu_custom_call.1} parent=1 // pred_fallthru
      _
    // Predicated region
    $region26: #{tpu_custom_call.1} parent=1 // pred_check
      _
    $region27: #{tpu_custom_call.1} parent=1 // pred_check_branch
      %39 = sbr.rel (0) target = $region29
    $region28: #{tpu_custom_call.1} parent=1 // pred_region
      _
    $region29: #{tpu_custom_call.1} parent=1 // pred_fallthru
      _
    // Predicated region
    $region30: #{tpu_custom_call.1} parent=1 // pred_check
      _
    $region31: #{tpu_custom_call.1} parent=1 // pred_check_branch
      %41 = sbr.rel (0) target = $region33
    $region32: #{tpu_custom_call.1} parent=1 // pred_region
      _
    $region33: #{tpu_custom_call.1} parent=1 // pred_fallthru
      _
    // Predicated region
    $region34: #{tpu_custom_call.1} parent=1 // pred_check
      _
    $region35: #{tpu_custom_call.1} parent=1 // pred_check_branch
      %43 = sbr.rel (0) target = $region37
    $region36: #{tpu_custom_call.1} parent=1 // pred_region
      _
    $region37: #{tpu_custom_call.1} parent=1 // pred_fallthru
      _
    // Predicated region
    $region38: #{tpu_custom_call.1} parent=1 // pred_check
      _
    $region39: #{tpu_custom_call.1} parent=1 // pred_check_branch
      %45 = sbr.rel (0) target = $region41
    $region40: #{tpu_custom_call.1} parent=1 // pred_region
      %47 = dma.done [#allocation3], 2048
    $region41: #{tpu_custom_call.1} parent=1 // pred_fallthru
      _
    %v49 = vld [vmem:[%s0] sm:$0xf]
    %v50 = vld [vmem:[%s0 + $0x4] sm:$0xf]
    %v51 = vld [vmem:[%s1] sm:$0xff]
    %v52 = vld [vmem:[%s1 + $0x8] sm:$0xff]
    %v53 = vld [vmem:[%s1 + $0x10] sm:$0xff]
    %v54 = vld [vmem:[%s1 + $0x18] sm:$0xff]
    %v55 = vld [vmem:[%s2] sm:$0x3]
    %v57 = vperm.slane %v55, 0
    %v58 = vperm.slane %v55, 1
    %v63 = vunpack.c.l.b16 %v49
    %v64 = vunpack.c.l.b16 %v50
    %v65 = vpack.c.b16 %v64, %v63
    %v70 = vunpack.c.l.b16 %v51
    %v71 = vunpack.c.h.b16 %v51
    %v72 = vunpack.c.l.b16 %v52
    %v73 = vunpack.c.h.b16 %v52
    %v74 = vunpack.c.l.b16 %v53
    %v75 = vunpack.c.h.b16 %v53
    %v76 = vunpack.c.l.b16 %v54
    %v77 = vunpack.c.h.b16 %v54
    %v78 = vpack.c.b16 %v72, %v70
    %v79 = vpack.c.b16 %v73, %v71
    %v80 = vpack.c.b16 %v76, %v74
    %v81 = vpack.c.b16 %v77, %v75
    %vm86 = vcmask 261120
    %v88 = vsel %vm86, %v65, 0
    %90 = vmatpush.bf16.msra.mxu0 0
    %91 = vmatpush.bf16.msra.mxu0 0
    %92 = vmatpush.bf16.msra.mxu0 0
    %93 = vmatpush.bf16.msra.mxu0 0
    %94 = vmatpush.bf16.msra.mxu0 0
    %95 = vmatpush.bf16.msra.mxu0 0
    %96 = vmatpush.bf16.msra.mxu0 %v80
    %97 = vmatpush.bf16.msra.mxu0 %v78
    %98 = vmatmul.bf16.gmra.mxu0 %v88
    %v99 = vpop.f32.mrf.mxu0
    %v100 = vadd.f32 %v57, %v99
    %v101 = vpop.f32.mrf.mxu0
    %v102 = vadd.f32 %v57, %v101
    %103 = vdwg.mxu0
    %104 = vmatpush.bf16.msra.mxu0 0
    %105 = vmatpush.bf16.msra.mxu0 0
    %106 = vmatpush.bf16.msra.mxu0 0
    %107 = vmatpush.bf16.msra.mxu0 0
    %108 = vmatpush.bf16.msra.mxu0 0
    %109 = vmatpush.bf16.msra.mxu0 0
    %110 = vmatpush.bf16.msra.mxu0 %v81
    %111 = vmatpush.bf16.msra.mxu0 %v79
    %112 = vmatmul.bf16.gmra.mxu0 %v88
    %v113 = vpop.f32.mrf.mxu0
    %v114 = vadd.f32 %v58, %v113
    %v115 = vpop.f32.mrf.mxu0
    %v116 = vadd.f32 %v58, %v115
    %117 = vdwg.mxu0
    %v118 = vmax.f32 %v100, 0.0
    %v119 = vmax.f32 %v114, 0.0
    %v120 = vmax.f32 %v102, 0.0
    %v121 = vmax.f32 %v116, 0.0
    %v122 = vpack.c.bf16 %v120, %v118
    %v123 = vpack.c.bf16 %v121, %v119
    %v124 = vld [vmem:[#allocation2] sm:$0xf]
    %v125 = vld [vmem:[#allocation2 + $0x4] sm:$0xf]
    %v126 = vld [vmem:[#allocation2 + $0x8] sm:$0xf]
    %v127 = vld [vmem:[#allocation2 + $0xc] sm:$0xf]
    %v128 = vld [vmem:[#allocation2 + $0x10] sm:$0xf]
    %v129 = vld [vmem:[#allocation2 + $0x14] sm:$0xf]
    %v130 = vld [vmem:[#allocation2 + $0x18] sm:$0xf]
    %v131 = vld [vmem:[#allocation2 + $0x1c] sm:$0xf]
    %v132 = vld [vmem:[#allocation2 + $0x20] sm:$0xf]
    %v133 = vld [vmem:[#allocation2 + $0x24] sm:$0xf]
    %v134 = vld [vmem:[#allocation2 + $0x28] sm:$0xf]
    %v135 = vld [vmem:[#allocation2 + $0x2c] sm:$0xf]
    %v136 = vld [vmem:[#allocation2 + $0x30] sm:$0xf]
    %v137 = vld [vmem:[#allocation2 + $0x34] sm:$0xf]
    %v138 = vld [vmem:[#allocation2 + $0x38] sm:$0xf]
    %v139 = vld [vmem:[#allocation2 + $0x3c] sm:$0xf]
    %v140 = vld [vmem:[#allocation2 + $0x40] sm:$0xf]
    %v141 = vld [vmem:[#allocation2 + $0x44] sm:$0xf]
    %v142 = vld [vmem:[#allocation2 + $0x48] sm:$0xf]
    %v143 = vld [vmem:[#allocation2 + $0x4c] sm:$0xf]
    %v144 = vld [vmem:[#allocation2 + $0x50] sm:$0xf]
    %v145 = vld [vmem:[#allocation2 + $0x54] sm:$0xf]
    %v146 = vld [vmem:[#allocation2 + $0x58] sm:$0xf]
    %v147 = vld [vmem:[#allocation2 + $0x5c] sm:$0xf]
    %v148 = vld [vmem:[#allocation2 + $0x60] sm:$0xf]
    %v149 = vld [vmem:[#allocation2 + $0x64] sm:$0xf]
    %v150 = vld [vmem:[#allocation2 + $0x68] sm:$0xf]
    %v151 = vld [vmem:[#allocation2 + $0x6c] sm:$0xf]
    %v152 = vld [vmem:[#allocation2 + $0x70] sm:$0xf]
    %v153 = vld [vmem:[#allocation2 + $0x74] sm:$0xf]
    %v154 = vld [vmem:[#allocation2 + $0x78] sm:$0xf]
    %v155 = vld [vmem:[#allocation2 + $0x7c] sm:$0xf]
    %v156 = vld [vmem:[%s4] sm:$0x1]
    %v158 = vperm.slane %v156, 0
    %v192 = vunpack.c.l.b16 %v124
    %v193 = vunpack.c.l.b16 %v125
    %v194 = vunpack.c.l.b16 %v126
    %v195 = vunpack.c.l.b16 %v127
    %v196 = vunpack.c.l.b16 %v128
    %v197 = vunpack.c.l.b16 %v129
    %v198 = vunpack.c.l.b16 %v130
    %v199 = vunpack.c.l.b16 %v131
    %v200 = vunpack.c.l.b16 %v132
    %v201 = vunpack.c.l.b16 %v133
    %v202 = vunpack.c.l.b16 %v134
    %v203 = vunpack.c.l.b16 %v135
    %v204 = vunpack.c.l.b16 %v136
    %v205 = vunpack.c.l.b16 %v137
    %v206 = vunpack.c.l.b16 %v138
    %v207 = vunpack.c.l.b16 %v139
    %v208 = vunpack.c.l.b16 %v140
    %v209 = vunpack.c.l.b16 %v141
    %v210 = vunpack.c.l.b16 %v142
    %v211 = vunpack.c.l.b16 %v143
    %v212 = vunpack.c.l.b16 %v144
    %v213 = vunpack.c.l.b16 %v145
    %v214 = vunpack.c.l.b16 %v146
    %v215 = vunpack.c.l.b16 %v147
    %v216 = vunpack.c.l.b16 %v148
    %v217 = vunpack.c.l.b16 %v149
    %v218 = vunpack.c.l.b16 %v150
    %v219 = vunpack.c.l.b16 %v151
    %v220 = vunpack.c.l.b16 %v152
    %v221 = vunpack.c.l.b16 %v153
    %v222 = vunpack.c.l.b16 %v154
    %v223 = vunpack.c.l.b16 %v155
    %v224 = vpack.c.b16 %v193, %v192
    %v225 = vpack.c.b16 %v195, %v194
    %v226 = vpack.c.b16 %v197, %v196
    %v227 = vpack.c.b16 %v199, %v198
    %v228 = vpack.c.b16 %v201, %v200
    %v229 = vpack.c.b16 %v203, %v202
    %v230 = vpack.c.b16 %v205, %v204
    %v231 = vpack.c.b16 %v207, %v206
    %v232 = vpack.c.b16 %v209, %v208
    %v233 = vpack.c.b16 %v211, %v210
    %v234 = vpack.c.b16 %v213, %v212
    %v235 = vpack.c.b16 %v215, %v214
    %v236 = vpack.c.b16 %v217, %v216
    %v237 = vpack.c.b16 %v219, %v218
    %v238 = vpack.c.b16 %v221, %v220
    %v239 = vpack.c.b16 %v223, %v222
    %256 = vmatpush.bf16.msra.mxu0 %v231
    %257 = vmatpush.bf16.msra.mxu0 %v230
    %258 = vmatpush.bf16.msra.mxu0 %v229
    %259 = vmatpush.bf16.msra.mxu0 %v228
    %260 = vmatpush.bf16.msra.mxu0 %v227
    %261 = vmatpush.bf16.msra.mxu0 %v226
    %262 = vmatpush.bf16.msra.mxu0 %v225
    %263 = vmatpush.bf16.msra.mxu0 %v224
    %264 = vmatmul.bf16.gmra.mxu0 %v122
    %v265 = vpop.f32.mrf.mxu0
    %v266 = vadd.f32 %v158, %v265
    %v267 = vpop.f32.mrf.mxu0
    %v268 = vadd.f32 %v158, %v267
    %269 = vdwg.mxu0
    %270 = vmatpush.bf16.msra.mxu0 %v239
    %271 = vmatpush.bf16.msra.mxu0 %v238
    %272 = vmatpush.bf16.msra.mxu0 %v237
    %273 = vmatpush.bf16.msra.mxu0 %v236
    %274 = vmatpush.bf16.msra.mxu0 %v235
    %275 = vmatpush.bf16.msra.mxu0 %v234
    %276 = vmatpush.bf16.msra.mxu0 %v233
    %277 = vmatpush.bf16.msra.mxu0 %v232
    %278 = vmatmul.bf16.gmra.mxu0 %v123
    %v279 = vpop.f32.mrf.mxu0
    %v280 = vadd.f32 %v266, %v279
    %v281 = vpop.f32.mrf.mxu0
    %v282 = vadd.f32 %v268, %v281
    %283 = vdwg.mxu0
    %v284 = vmax.f32 %v280, 0.0
    %v285 = vmax.f32 %v282, 0.0
    %v286 = vpack.c.bf16 %v285, %v284
    %v287 = vld [vmem:[%s5] sm:$0xf]
    %v288 = vld [vmem:[%s5 + $0x4] sm:$0xf]
    %v289 = vld [vmem:[%s5 + $0x8] sm:$0xf]
    %v290 = vld [vmem:[%s5 + $0xc] sm:$0xf]
    %v291 = vld [vmem:[%s5 + $0x10] sm:$0xf]
    %v292 = vld [vmem:[%s5 + $0x14] sm:$0xf]
    %v293 = vld [vmem:[%s5 + $0x18] sm:$0xf]
    %v294 = vld [vmem:[%s5 + $0x1c] sm:$0xf]
    %v295 = vld [vmem:[%s5 + $0x20] sm:$0xf]
    %v296 = vld [vmem:[%s5 + $0x24] sm:$0xf]
    %v297 = vld [vmem:[%s5 + $0x28] sm:$0xf]
    %v298 = vld [vmem:[%s5 + $0x2c] sm:$0xf]
    %v299 = vld [vmem:[%s5 + $0x30] sm:$0xf]
    %v300 = vld [vmem:[%s5 + $0x34] sm:$0xf]
    %v301 = vld [vmem:[%s5 + $0x38] sm:$0xf]
    %v302 = vld [vmem:[%s5 + $0x3c] sm:$0xf]
    %v303 = vld [vmem:[%s6] sm:$0x1]
    %v305 = vperm.slane %v303, 0
    %v323 = vunpack.c.l.b16 %v287
    %v324 = vunpack.c.l.b16 %v288
    %v325 = vunpack.c.l.b16 %v289
    %v326 = vunpack.c.l.b16 %v290
    %v327 = vunpack.c.l.b16 %v291
    %v328 = vunpack.c.l.b16 %v292
    %v329 = vunpack.c.l.b16 %v293
    %v330 = vunpack.c.l.b16 %v294
    %v331 = vunpack.c.l.b16 %v295
    %v332 = vunpack.c.l.b16 %v296
    %v333 = vunpack.c.l.b16 %v297
    %v334 = vunpack.c.l.b16 %v298
    %v335 = vunpack.c.l.b16 %v299
    %v336 = vunpack.c.l.b16 %v300
    %v337 = vunpack.c.l.b16 %v301
    %v338 = vunpack.c.l.b16 %v302
    %v339 = vpack.c.b16 %v324, %v323
    %v340 = vpack.c.b16 %v326, %v325
    %v341 = vpack.c.b16 %v328, %v327
    %v342 = vpack.c.b16 %v330, %v329
    %v343 = vpack.c.b16 %v332, %v331
    %v344 = vpack.c.b16 %v334, %v333
    %v345 = vpack.c.b16 %v336, %v335
    %v346 = vpack.c.b16 %v338, %v337
    %355 = vmatpush.bf16.msra.mxu0 %v346
    %356 = vmatpush.bf16.msra.mxu0 %v345
    %357 = vmatpush.bf16.msra.mxu0 %v344
    %358 = vmatpush.bf16.msra.mxu0 %v343
    %359 = vmatpush.bf16.msra.mxu0 %v342
    %360 = vmatpush.bf16.msra.mxu0 %v341
    %361 = vmatpush.bf16.msra.mxu0 %v340
    %362 = vmatpush.bf16.msra.mxu0 %v339
    %363 = vmatmul.bf16.gmra.mxu0 %v286
    %v364 = vpop.f32.mrf.mxu0
    %v365 = vadd.f32 %v305, %v364
    %v366 = vpop.f32.mrf.mxu0
    %v367 = vadd.f32 %v305, %v366
    %368 = vdwg.mxu0
    %v369 = vmax.f32 %v365, 0.0
    %v370 = vmax.f32 %v367, 0.0
    %v371 = vpack.c.bf16 %v370, %v369
    %v372 = vld [vmem:[%s7] sm:$0xf]
    %v373 = vld [vmem:[%s7 + $0x4] sm:$0xf]
    %v374 = vld [vmem:[%s7 + $0x8] sm:$0xf]
    %v375 = vld [vmem:[%s7 + $0xc] sm:$0xf]
    %v376 = vld [vmem:[%s7 + $0x10] sm:$0xf]
    %v377 = vld [vmem:[%s7 + $0x14] sm:$0xf]
    %v378 = vld [vmem:[%s7 + $0x18] sm:$0xf]
    %v379 = vld [vmem:[%s7 + $0x1c] sm:$0xf]
    %v380 = vld [vmem:[%s8] sm:$0x1]
    %v382 = vperm.slane %v380, 0
    %v392 = vunpack.c.l.b16 %v372
    %v393 = vunpack.c.l.b16 %v373
    %v394 = vunpack.c.l.b16 %v374
    %v395 = vunpack.c.l.b16 %v375
    %v396 = vunpack.c.l.b16 %v376
    %v397 = vunpack.c.l.b16 %v377
    %v398 = vunpack.c.l.b16 %v378
    %v399 = vunpack.c.l.b16 %v379
    %v400 = vpack.c.b16 %v393, %v392
    %v401 = vpack.c.b16 %v395, %v394
    %v402 = vpack.c.b16 %v397, %v396
    %v403 = vpack.c.b16 %v399, %v398
    %vm408 = vcmask 523264
    %v410 = vsel %vm408, %v371, 0
    %412 = vmatpush.bf16.msra.mxu0 0
    %413 = vmatpush.bf16.msra.mxu0 0
    %414 = vmatpush.bf16.msra.mxu0 0
    %415 = vmatpush.bf16.msra.mxu0 0
    %416 = vmatpush.bf16.msra.mxu0 %v403
    %417 = vmatpush.bf16.msra.mxu0 %v402
    %418 = vmatpush.bf16.msra.mxu0 %v401
    %419 = vmatpush.bf16.msra.mxu0 %v400
    %420 = vmatmul.bf16.gmra.mxu0 %v410
    %v421 = vpop.f32.mrf.mxu0
    %v422 = vadd.f32 %v382, %v421
    %v423 = vpop.f32.mrf.mxu0
    %v424 = vadd.f32 %v382, %v423
    %425 = vdwg.mxu0
    %vm426 = vcmask 64512
    %427 = vst.msk [vmem:[%s9] sm:$0xff] %vm426, %v422
    %428 = vst.msk [vmem:[%s9 + $0x8] sm:$0xff] %vm426, %v424
    // Predicated region
    $region42: #{tpu_custom_call.1} parent=1 // pred_check
      _
    $region43: #{tpu_custom_call.1} parent=1 // pred_check_branch
      %430 = sbr.rel (0) target = $region45
    $region44: #{tpu_custom_call.1} parent=1 // pred_region
      _
    $region45: #{tpu_custom_call.1} parent=1 // pred_fallthru
      _
    // Predicated region
    $region46: #{tpu_custom_call.1} parent=1 // pred_check
      _
    $region47: #{tpu_custom_call.1} parent=1 // pred_check_branch
      %432 = sbr.rel (0) target = $region49
    $region48: #{tpu_custom_call.1} parent=1 // pred_region
      _
    $region49: #{tpu_custom_call.1} parent=1 // pred_fallthru
      _
    %433 = vsyncpa [#allocation3], 1

</llo_original>
